<compile_context>
chip_gen: v7x
topology: tpu7x:2x2x1
jax: 0.10.0
libtpu: 0.0.40
codegen_flags: <defaults>
</compile_context>

<pallas_src>
import jax
import jax.numpy as jnp
from jax.experimental import pallas as pl
from jax.experimental.pallas import tpu as pltpu


def _round_up(x, m):
    return (x + m - 1) // m * m


def conv_block_forward(x_nchw, params, *, eps=1e-5):
    """Reproduces Conv_Block.forward (PyTorch training-mode BN: batch statistics)."""
    gamma = params["gamma"].astype(jnp.float32)
    beta = params["beta"].astype(jnp.float32)
    w = params["weight"].astype(jnp.float32)   # (Cout, Cin, 3, 3) OIHW
    b = params["bias"].astype(jnp.float32)     # (Cout,)

    N, C, H, W = x_nchw.shape
    Cout = w.shape[0]

    Wp = W + 2                         # padded width
    Hp = H + 3                         # height padded (1 top, 2 bottom)
    L_in = Hp * Wp                     # flattened padded spatial length
    L_out = H * Wp                     # output rows over padded width (junk cols dropped)
    C_r = _round_up(C, 8)              # sublane-aligned input channels
    Cout_r = _round_up(Cout, 8)        # sublane-aligned output channels

    # Invariant that makes the right-edge "junk" output columns safe: the furthest
    # window read, (2*Wp + 2) + L_out, must stay inside the asymmetric (1, 2) height
    # pad. Shrinking the bottom pad would silently read out of the block.
    assert 2 * Wp + 2 + L_out <= L_in, "asymmetric height pad (1,2) invariant violated"

    x = x_nchw.astype(jnp.float32)

    # ---- BatchNorm batch statistics (biased var, as torch training mode) -----------
    mean = jnp.mean(x, axis=(0, 2, 3))
    var = jnp.var(x, axis=(0, 2, 3))
    inv_std = 1.0 / jnp.sqrt(var + eps)
    scale = gamma * inv_std
    shift = beta - mean * scale
    scale_col = jnp.pad(scale, (0, C_r - C)).reshape(C_r, 1)
    shift_col = jnp.pad(shift, (0, C_r - C)).reshape(C_r, 1)

    # ---- activation: channel-major, channel-padded, spatially padded, flattened ----
    xq = jnp.pad(x, ((0, 0), (0, C_r - C), (0, 0), (0, 0)))
    xp = jnp.pad(xq, ((0, 0), (0, 0), (1, 2), (1, 1)))          # (N, C_r, Hp, Wp)
    x_flat = xp.reshape(N, C_r, L_in)

    # Validity mask (1 inside the original image). BN+ReLU of the zero padding would
    # be relu(shift) != 0, but Conv2d pads the *post-activation* tensor with zeros.
    # Lane-dense (1, L_in) so it lands in a single thin VMEM tile.
    hh = jnp.arange(Hp)
    ww = jnp.arange(Wp)
    valid = ((hh[:, None] >= 1) & (hh[:, None] <= H)
             & (ww[None, :] >= 1) & (ww[None, :] <= W))
    mask = valid.astype(jnp.float32).reshape(1, L_in)

    # ---- weights: OIHW -> tap-major (Cout_r, 9*C_r), bf16 for the MXU --------------
    wk = jnp.transpose(w, (0, 2, 3, 1))                          # (Cout, 3, 3, Cin)
    wk = jnp.pad(wk, ((0, Cout_r - Cout), (0, 0), (0, 0), (0, C_r - C)))
    w_flat = wk.reshape(Cout_r, 9 * C_r).astype(jnp.bfloat16)
    b_col = jnp.pad(b, (0, Cout_r - Cout)).reshape(Cout_r, 1)

    # ---- fused BN + ReLU + im2col + single-matmul conv kernel ----------------------
    def kernel(x_ref, m_ref, sc_ref, sh_ref, w_ref, b_ref, o_ref):
        xin = x_ref[0]                                                  # (C_r, L_in) f32
        # BN affine + ReLU, then force the padded ring back to exact zero.
        a = jnp.maximum(xin * sc_ref[...] + sh_ref[...], 0.0) * m_ref[...]
        # Stack the 9 lane-shifted windows along sublanes -> (9*C_r, L_out) im2col
        # (every slab is 8-row aligned since C_r % 8 == 0), cast ONCE to bf16, then
        # ONE K=9*C_r MXU matmul: accumulation stays in the MXU, no spilled acc.
        cols = jnp.concatenate(
            [a[:, dy * Wp + dx:dy * Wp + dx + L_out]
             for dy in range(3) for dx in range(3)],
            axis=0,
        ).astype(jnp.bfloat16)
        out = jnp.dot(w_ref[...], cols, preferred_element_type=jnp.float32)
        o_ref[0] = out + b_ref[...]                                     # (Cout_r, L_out)

    flops = 2 * N * H * W * 9 * C * Cout
    bytes_accessed = int(x_flat.size * 4 + mask.size * 4 + w_flat.size * 2
                         + N * Cout_r * L_out * 4)

    out_flat = pl.pallas_call(
        kernel,
        out_shape=jax.ShapeDtypeStruct((N, Cout_r, L_out), jnp.float32),
        grid=(N,),
        in_specs=[
            pl.BlockSpec((1, C_r, L_in), lambda n: (n, 0, 0)),   # activation (per image)
            pl.BlockSpec((1, L_in), lambda n: (0, 0)),           # spatial validity mask
            pl.BlockSpec((C_r, 1), lambda n: (0, 0)),            # BN scale (per channel)
            pl.BlockSpec((C_r, 1), lambda n: (0, 0)),            # BN shift
            pl.BlockSpec((Cout_r, 9 * C_r), lambda n: (0, 0)),   # conv weights (bf16)
            pl.BlockSpec((Cout_r, 1), lambda n: (0, 0)),         # bias
        ],
        out_specs=pl.BlockSpec((1, Cout_r, L_out), lambda n: (n, 0, 0)),
        compiler_params=pltpu.CompilerParams(
            dimension_semantics=("parallel",),
        ),
        cost_estimate=pl.CostEstimate(
            flops=flops, transcendentals=0, bytes_accessed=bytes_accessed),
    )(x_flat, mask, scale_col, shift_col, w_flat, b_col)

    # Output is already channel-major (NCHW): drop the channel padding and the 2 junk
    # right-edge columns per row.
    out = out_flat[:, :Cout, :].reshape(N, Cout, H, Wp)[:, :, :, :W]
    return out


def _reference(x_nchw, params, eps=1e-5):
    """Pure-JAX (f32) reference of the same forward for a correctness check."""
    gamma = params["gamma"].reshape(1, -1, 1, 1)
    beta = params["beta"].reshape(1, -1, 1, 1)
    w = params["weight"]
    b = params["bias"].reshape(1, -1, 1, 1)
    mean = jnp.mean(x_nchw, axis=(0, 2, 3), keepdims=True)
    var = jnp.var(x_nchw, axis=(0, 2, 3), keepdims=True)
    xn = (x_nchw - mean) / jnp.sqrt(var + eps) * gamma + beta
    xr = jnp.maximum(xn, 0.0)
    y = jax.lax.conv_general_dilated(
        xr, w, window_strides=(1, 1), padding=((1, 1), (1, 1)),
        dimension_numbers=("NCHW", "OIHW", "NCHW"),
    )
    return y + b


if __name__ == "__main__":
    # Small shapes consistent with the module: batch=2, ch_in=4, ch_out=8, spatial=16.
    N, CH_IN, CH_OUT, H, W = 2, 4, 8, 16, 16

    key = jax.random.PRNGKey(0)
    kx, kg, kb, kw, kbias = jax.random.split(key, 5)

    x = jax.random.normal(kx, (N, CH_IN, H, W), dtype=jnp.float32)
    params = {
        # BatchNorm2d(ch_in) affine params (deterministic synthetic init)
        "gamma": 1.0 + 0.1 * jax.random.normal(kg, (CH_IN,), dtype=jnp.float32),
        "beta": 0.1 * jax.random.normal(kb, (CH_IN,), dtype=jnp.float32),
        # Conv2d(ch_in, ch_out, kernel_size=3) weight/bias
        "weight": 0.1 * jax.random.normal(kw, (CH_OUT, CH_IN, 3, 3), dtype=jnp.float32),
        "bias": 0.1 * jax.random.normal(kbias, (CH_OUT,), dtype=jnp.float32),
    }

    y = conv_block_forward(x, params)
    y = jax.block_until_ready(y)

    y_ref = _reference(x, params)
    assert y.shape == (N, CH_OUT, H, W)
    # Tolerance loosened vs f32 reference because matmul operands are bf16 (f32 accum).
    assert jnp.allclose(y, y_ref, atol=3e-2, rtol=3e-2), "mismatch vs JAX reference"

    print("KERNEL_OK")
</pallas_src>

<mosaic_0001>
module attributes {stable_mosaic.version = 11 : i64} {
  func.func @kernel(%arg0: i32, %arg1: memref<1x8x342xf32, #tpu.memory_space<vmem>>, %arg2: memref<1x342xf32, #tpu.memory_space<vmem>>, %arg3: memref<8x1xf32, #tpu.memory_space<vmem>>, %arg4: memref<8x1xf32, #tpu.memory_space<vmem>>, %arg5: memref<8x72xbf16, #tpu.memory_space<vmem>>, %arg6: memref<8x1xf32, #tpu.memory_space<vmem>>, %arg7: memref<1x8x288xf32, #tpu.memory_space<vmem>>) attributes {dimension_semantics = [#tpu.dimension_semantics<parallel>], iteration_bounds = array<i64: 2>, scalar_prefetch = 0 : i64, scratch_operands = 0 : i64, tpu.core_type = #tpu.core_type<tc>, window_params = [{transform_indices = @transform_0, window_bounds = array<i64: 1, 8, 342>}, {pipeline_mode = #tpu.pipeline_mode<synchronous>, transform_indices = @transform_1, window_bounds = array<i64: 1, 342>}, {pipeline_mode = #tpu.pipeline_mode<synchronous>, transform_indices = @transform_2, window_bounds = array<i64: 8, 1>}, {pipeline_mode = #tpu.pipeline_mode<synchronous>, transform_indices = @transform_3, window_bounds = array<i64: 8, 1>}, {pipeline_mode = #tpu.pipeline_mode<synchronous>, transform_indices = @transform_4, window_bounds = array<i64: 8, 72>}, {pipeline_mode = #tpu.pipeline_mode<synchronous>, transform_indices = @transform_5, window_bounds = array<i64: 8, 1>}, {transform_indices = @transform_6, window_bounds = array<i64: 1, 8, 288>}]} {
    %c0 = arith.constant 0 : index
    %c0_0 = arith.constant 0 : index
    %c0_1 = arith.constant 0 : index
    %0 = vector.load %arg1[%c0, %c0_0, %c0_1] : memref<1x8x342xf32, #tpu.memory_space<vmem>>, vector<1x8x342xf32>
    %1 = vector.shape_cast %0 : vector<1x8x342xf32> to vector<8x342xf32>
    %c0_2 = arith.constant 0 : index
    %c0_3 = arith.constant 0 : index
    %2 = vector.load %arg3[%c0_2, %c0_3] : memref<8x1xf32, #tpu.memory_space<vmem>>, vector<8x1xf32>
    %3 = vector.broadcast %2 : vector<8x1xf32> to vector<8x342xf32>
    %4 = arith.mulf %1, %3 : vector<8x342xf32>
    %c0_4 = arith.constant 0 : index
    %c0_5 = arith.constant 0 : index
    %5 = vector.load %arg4[%c0_4, %c0_5] : memref<8x1xf32, #tpu.memory_space<vmem>>, vector<8x1xf32>
    %6 = vector.broadcast %5 : vector<8x1xf32> to vector<8x342xf32>
    %7 = arith.addf %4, %6 : vector<8x342xf32>
    %cst = arith.constant 0.000000e+00 : f32
    %8 = vector.broadcast %cst : f32 to vector<8x342xf32>
    %9 = arith.maximumf %7, %8 : vector<8x342xf32>
    %c0_6 = arith.constant 0 : index
    %c0_7 = arith.constant 0 : index
    %10 = vector.load %arg2[%c0_6, %c0_7] : memref<1x342xf32, #tpu.memory_space<vmem>>, vector<1x342xf32>
    %11 = vector.broadcast %10 : vector<1x342xf32> to vector<8x342xf32>
    %12 = arith.mulf %9, %11 : vector<8x342xf32>
    %13 = vector.extract_strided_slice %12 {offsets = [0, 0], sizes = [8, 288], strides = [1, 1]} : vector<8x342xf32> to vector<8x288xf32>
    %14 = vector.extract_strided_slice %12 {offsets = [0, 1], sizes = [8, 288], strides = [1, 1]} : vector<8x342xf32> to vector<8x288xf32>
    %15 = vector.extract_strided_slice %12 {offsets = [0, 2], sizes = [8, 288], strides = [1, 1]} : vector<8x342xf32> to vector<8x288xf32>
    %16 = vector.extract_strided_slice %12 {offsets = [0, 18], sizes = [8, 288], strides = [1, 1]} : vector<8x342xf32> to vector<8x288xf32>
    %17 = vector.extract_strided_slice %12 {offsets = [0, 19], sizes = [8, 288], strides = [1, 1]} : vector<8x342xf32> to vector<8x288xf32>
    %18 = vector.extract_strided_slice %12 {offsets = [0, 20], sizes = [8, 288], strides = [1, 1]} : vector<8x342xf32> to vector<8x288xf32>
    %19 = vector.extract_strided_slice %12 {offsets = [0, 36], sizes = [8, 288], strides = [1, 1]} : vector<8x342xf32> to vector<8x288xf32>
    %20 = vector.extract_strided_slice %12 {offsets = [0, 37], sizes = [8, 288], strides = [1, 1]} : vector<8x342xf32> to vector<8x288xf32>
    %21 = vector.extract_strided_slice %12 {offsets = [0, 38], sizes = [8, 288], strides = [1, 1]} : vector<8x342xf32> to vector<8x288xf32>
    %22 = tpu.concatenate %13, %14, %15, %16, %17, %18, %19, %20, %21 in 0 : vector<8x288xf32>, vector<8x288xf32>, vector<8x288xf32>, vector<8x288xf32>, vector<8x288xf32>, vector<8x288xf32>, vector<8x288xf32>, vector<8x288xf32>, vector<8x288xf32> -> vector<72x288xf32>
    %23 = arith.truncf %22 : vector<72x288xf32> to vector<72x288xbf16>
    %c0_8 = arith.constant 0 : index
    %c0_9 = arith.constant 0 : index
    %24 = vector.load %arg5[%c0_8, %c0_9] : memref<8x72xbf16, #tpu.memory_space<vmem>>, vector<8x72xbf16>
    %cst_10 = arith.constant dense<0.000000e+00> : vector<8x288xf32>
    %25 = tpu.matmul %24, %23, %cst_10 {dimension_numbers = #tpu.dot_dimension_numbers<[1], [0], [0], [1], [0, 0, 1, 1], [], []>} : vector<8x72xbf16>, vector<72x288xbf16>, vector<8x288xf32> -> vector<8x288xf32>
    %c0_11 = arith.constant 0 : index
    %c0_12 = arith.constant 0 : index
    %26 = vector.load %arg6[%c0_11, %c0_12] : memref<8x1xf32, #tpu.memory_space<vmem>>, vector<8x1xf32>
    %27 = vector.broadcast %26 : vector<8x1xf32> to vector<8x288xf32>
    %28 = arith.addf %25, %27 : vector<8x288xf32>
    %c0_13 = arith.constant 0 : index
    %c0_14 = arith.constant 0 : index
    %c0_15 = arith.constant 0 : index
    %29 = vector.load %arg7[%c0_13, %c0_14, %c0_15] : memref<1x8x288xf32, #tpu.memory_space<vmem>>, vector<1x8x288xf32>
    %30 = vector.shape_cast %29 : vector<1x8x288xf32> to vector<8x288xf32>
    %31 = vector.shape_cast %28 : vector<8x288xf32> to vector<1x8x288xf32>
    tpu.vector_store %arg7[%c0_13, %c0_14, %c0_15], %31 {strides = array<i32>} : memref<1x8x288xf32, #tpu.memory_space<vmem>>, vector<1x8x288xf32>,
    return
  }
  func.func @transform_0(%arg0: i32) -> (i32, i32, i32) {
    %c0_i32 = arith.constant 0 : i32
    %c0_i32_0 = arith.constant 0 : i32
    %c0_i32_1 = arith.constant 0 : i32
    return %arg0, %c0_i32, %c0_i32_0 : i32, i32, i32
  }
  func.func @transform_1(%arg0: i32) -> (i32, i32) {
    %c0_i32 = arith.constant 0 : i32
    %c0_i32_0 = arith.constant 0 : i32
    %c0_i32_1 = arith.constant 0 : i32
    return %c0_i32, %c0_i32_0 : i32, i32
  }
  func.func @transform_2(%arg0: i32) -> (i32, i32) {
    %c0_i32 = arith.constant 0 : i32
    %c0_i32_0 = arith.constant 0 : i32
    %c0_i32_1 = arith.constant 0 : i32
    return %c0_i32, %c0_i32_0 : i32, i32
  }
  func.func @transform_3(%arg0: i32) -> (i32, i32) {
    %c0_i32 = arith.constant 0 : i32
    %c0_i32_0 = arith.constant 0 : i32
    %c0_i32_1 = arith.constant 0 : i32
    return %c0_i32, %c0_i32_0 : i32, i32
  }
  func.func @transform_4(%arg0: i32) -> (i32, i32) {
    %c0_i32 = arith.constant 0 : i32
    %c0_i32_0 = arith.constant 0 : i32
    %c0_i32_1 = arith.constant 0 : i32
    return %c0_i32, %c0_i32_0 : i32, i32
  }
  func.func @transform_5(%arg0: i32) -> (i32, i32) {
    %c0_i32 = arith.constant 0 : i32
    %c0_i32_0 = arith.constant 0 : i32
    %c0_i32_1 = arith.constant 0 : i32
    return %c0_i32, %c0_i32_0 : i32, i32
  }
  func.func @transform_6(%arg0: i32) -> (i32, i32, i32) {
    %c0_i32 = arith.constant 0 : i32
    %c0_i32_0 = arith.constant 0 : i32
    %c0_i32_1 = arith.constant 0 : i32
    return %arg0, %c0_i32, %c0_i32_0 : i32, i32, i32
  }
}

</mosaic_0001>

<llo_original>
// kernel: tpu_custom_call.1
$region0: #{tpu_custom_call.1}
  #allocation0 [shape = 'u32[]', space=smem, size = 0x4, offset = 0x4, fixed_abs, tag = 'smem constant byte address 0x4 - core index']
  #allocation1 [shape = 'u32[144,128]{1,0:T(1,128)}', space=vmem, size = 0x12000, scoped, tag = 'internal scratch']
  %s0 = inlined_call_operand.hbm [shape: f32[2,8,342], index: 0, kind: input, shape index: {}]
  %s1 = inlined_call_operand.vmem [shape: f32[1,342], index: 1, kind: input, shape index: {}]
  %s2 = inlined_call_operand.vmem [shape: f32[8,1], index: 2, kind: input, shape index: {}]
  %s3 = inlined_call_operand.vmem [shape: f32[8,1], index: 3, kind: input, shape index: {}]
  %s4 = inlined_call_operand.vmem [shape: bf16[8,72], index: 4, kind: input, shape index: {}]
  %s5 = inlined_call_operand.vmem [shape: f32[8,1], index: 5, kind: input, shape index: {}]
  %s6 = inlined_call_operand.hbm [shape: f32[2,8,288], index: 6, kind: output, shape index: {}]
  %s7 = sld [smem:[#allocation0]]
  $region61: #{tpu_custom_call.1} parent=0
    _
  %s9 = ssub.s32 1, %s7
  %s10 = scalar_select 0, %s9, %s7
  $region1: #{tpu_custom_call.1} parent=0
    #allocation2 [shape = 'u8[24576]{0}', space=vmem, size = 0x6000, scoped, tag = 'input window, operand 0']
    #allocation3 [shape = 's32[2]{0}', space=sflag, size = 0x8, scoped, tag = 'scoped memory for tpu_custom_call.1']
    #allocation4 [shape = 's32[2]{0}', space=sflag, size = 0x8, scoped, tag = 'scoped memory for tpu_custom_call.1']
    #allocation5 [shape = 'u8[24576]{0}', space=vmem, size = 0x6000, scoped, tag = 'output window, operand 0']
    %11 = vsyncpa [#allocation3], 0
    %s12 = scalar_lea.sflag [#allocation3], 1
    %13 = vsyncpa %s12, 0
    %14 = vsyncpa [#allocation4], 0
    %s15 = scalar_lea.sflag [#allocation4], 1
    %16 = vsyncpa %s15, 0
    loop: start=0, step=1, limit=4
    $region2: #{tpu_custom_call.1} parent=1 // loop_pre_header
      _
    $region3: #{tpu_custom_call.1} parent=1 // loop_header
      %s18 = sphi 0, %s22
      %p19 = scmp.ge.s32.totalorder %s18, 4
      %s28 = sphi 0, %s30
      %s31 = sphi 0, %s28
      %s32 = sphi 0, %s31
      %s48 = sphi 0, %s32
      %s52 = sphi 0, %s52
      %s54 = sphi 0, %s52
      %s55 = sphi 0, %s54
      %s69 = sphi 0, %s55
      %s73 = sphi 0, %s73
      %s75 = sphi 0, %s73
      %s76 = sphi 0, %s75
      %s90 = sphi 0, %s76
      %s94 = sphi 0, %s94
      %s96 = sphi 0, %s94
      %s97 = sphi 0, %s96
      %s111 = sphi 0, %s97
      %s115 = sphi 0, %s115
      %s117 = sphi 0, %s115
      %s118 = sphi 0, %s117
      %s132 = sphi 0, %s118
      %s136 = sphi 0, %s136
      %s138 = sphi 0, %s136
      %s139 = sphi 0, %s138
      %s153 = sphi 0, %s139
      %s159 = sphi 0, %s161
      %s162 = sphi 0, %s159
      %s163 = sphi 0, %s162
      %s179 = sphi 0, %s163
    $region4: #{tpu_custom_call.1} parent=1 // loop_header_branch
      %21 = sbr.rel (%p19) target = $region8
    $region5: #{tpu_custom_call.1} parent=1 // loop_body
      %s23 = ssub.s32 %s18, 1
      %s24 = ssub.s32 %s18, 2
      %s25 = sadd.s32 %s18, 1
      %s26 = ssub.s32 %s18, %s25
      %p27 = scmp.eq.s32.totalorder %s26, 0
      %s29 = sadd.s32 %s28, 1
      %s30 = scalar_select %p27, %s28, %s29
      %p33 = pneg %p27
      %p34 = scmp.eq.s32.totalorder %s18, 1
      %p35 = por %p33, %p34
      %p36 = scmp.ne.s32.totalorder %s28, %s31
      %p37 = scmp.eq.s32.totalorder %s18, 0
      %p38 = por %p36, %p37
      %p39 = scmp.ne.s32.totalorder %s28, %s31
      %p40 = scmp.eq.s32.totalorder %s23, 1
      %p41 = por %p39, %p40
      %p42 = scmp.ne.s32.totalorder %s31, %s32
      %p43 = scmp.eq.s32.totalorder %s23, 0
      %p44 = por %p42, %p43
      %p45 = scmp.ne.s32.totalorder %s31, %s32
      %p46 = scmp.eq.s32.totalorder %s24, 1
      %p47 = por %p45, %p46
      %p49 = scmp.ne.s32.totalorder %s32, %s48
      %p50 = scmp.eq.s32.totalorder %s24, 0
      %p51 = por %p49, %p50
      %s53 = sadd.s32 %s52, 1
      %p56 = scmp.eq.s32.totalorder %s18, 1
      %p57 = scmp.ne.s32.totalorder %s52, %s54
      %p58 = scmp.eq.s32.totalorder %s18, 0
      %p59 = por %p57, %p58
      %p60 = scmp.ne.s32.totalorder %s52, %s54
      %p61 = scmp.eq.s32.totalorder %s23, 1
      %p62 = por %p60, %p61
      %p63 = scmp.ne.s32.totalorder %s54, %s55
      %p64 = scmp.eq.s32.totalorder %s23, 0
      %p65 = por %p63, %p64
      %p66 = scmp.ne.s32.totalorder %s54, %s55
      %p67 = scmp.eq.s32.totalorder %s24, 1
      %p68 = por %p66, %p67
      %p70 = scmp.ne.s32.totalorder %s55, %s69
      %p71 = scmp.eq.s32.totalorder %s24, 0
      %p72 = por %p70, %p71
      %s74 = sadd.s32 %s73, 1
      %p77 = scmp.eq.s32.totalorder %s18, 1
      %p78 = scmp.ne.s32.totalorder %s73, %s75
      %p79 = scmp.eq.s32.totalorder %s18, 0
      %p80 = por %p78, %p79
      %p81 = scmp.ne.s32.totalorder %s73, %s75
      %p82 = scmp.eq.s32.totalorder %s23, 1
      %p83 = por %p81, %p82
      %p84 = scmp.ne.s32.totalorder %s75, %s76
      %p85 = scmp.eq.s32.totalorder %s23, 0
      %p86 = por %p84, %p85
      %p87 = scmp.ne.s32.totalorder %s75, %s76
      %p88 = scmp.eq.s32.totalorder %s24, 1
      %p89 = por %p87, %p88
      %p91 = scmp.ne.s32.totalorder %s76, %s90
      %p92 = scmp.eq.s32.totalorder %s24, 0
      %p93 = por %p91, %p92
      %s95 = sadd.s32 %s94, 1
      %p98 = scmp.eq.s32.totalorder %s18, 1
      %p99 = scmp.ne.s32.totalorder %s94, %s96
      %p100 = scmp.eq.s32.totalorder %s18, 0
      %p101 = por %p99, %p100
      %p102 = scmp.ne.s32.totalorder %s94, %s96
      %p103 = scmp.eq.s32.totalorder %s23, 1
      %p104 = por %p102, %p103
      %p105 = scmp.ne.s32.totalorder %s96, %s97
      %p106 = scmp.eq.s32.totalorder %s23, 0
      %p107 = por %p105, %p106
      %p108 = scmp.ne.s32.totalorder %s96, %s97
      %p109 = scmp.eq.s32.totalorder %s24, 1
      %p110 = por %p108, %p109
      %p112 = scmp.ne.s32.totalorder %s97, %s111
      %p113 = scmp.eq.s32.totalorder %s24, 0
      %p114 = por %p112, %p113
      %s116 = sadd.s32 %s115, 1
      %p119 = scmp.eq.s32.totalorder %s18, 1
      %p120 = scmp.ne.s32.totalorder %s115, %s117
      %p121 = scmp.eq.s32.totalorder %s18, 0
      %p122 = por %p120, %p121
      %p123 = scmp.ne.s32.totalorder %s115, %s117
      %p124 = scmp.eq.s32.totalorder %s23, 1
      %p125 = por %p123, %p124
      %p126 = scmp.ne.s32.totalorder %s117, %s118
      %p127 = scmp.eq.s32.totalorder %s23, 0
      %p128 = por %p126, %p127
      %p129 = scmp.ne.s32.totalorder %s117, %s118
      %p130 = scmp.eq.s32.totalorder %s24, 1
      %p131 = por %p129, %p130
      %p133 = scmp.ne.s32.totalorder %s118, %s132
      %p134 = scmp.eq.s32.totalorder %s24, 0
      %p135 = por %p133, %p134
      %s137 = sadd.s32 %s136, 1
      %p140 = scmp.eq.s32.totalorder %s18, 1
      %p141 = scmp.ne.s32.totalorder %s136, %s138
      %p142 = scmp.eq.s32.totalorder %s18, 0
      %p143 = por %p141, %p142
      %p144 = scmp.ne.s32.totalorder %s136, %s138
      %p145 = scmp.eq.s32.totalorder %s23, 1
      %p146 = por %p144, %p145
      %p147 = scmp.ne.s32.totalorder %s138, %s139
      %p148 = scmp.eq.s32.totalorder %s23, 0
      %p149 = por %p147, %p148
      %p150 = scmp.ne.s32.totalorder %s138, %s139
      %p151 = scmp.eq.s32.totalorder %s24, 1
      %p152 = por %p150, %p151
      %p154 = scmp.ne.s32.totalorder %s139, %s153
      %p155 = scmp.eq.s32.totalorder %s24, 0
      %p156 = por %p154, %p155
      %s157 = ssub.s32 %s18, %s25
      %p158 = scmp.eq.s32.totalorder %s157, 0
      %s160 = sadd.s32 %s159, 1
      %s161 = scalar_select %p158, %s159, %s160
      %p164 = pneg %p158
      %p165 = scmp.eq.s32.totalorder %s18, 1
      %p166 = por %p164, %p165
      %p167 = scmp.ne.s32.totalorder %s159, %s162
      %p168 = scmp.eq.s32.totalorder %s18, 0
      %p169 = por %p167, %p168
      %p170 = scmp.ne.s32.totalorder %s159, %s162
      %p171 = scmp.eq.s32.totalorder %s23, 1
      %p172 = por %p170, %p171
      %p173 = scmp.ne.s32.totalorder %s162, %s163
      %p174 = scmp.eq.s32.totalorder %s23, 0
      %p175 = por %p173, %p174
      %p176 = scmp.ne.s32.totalorder %s162, %s163
      %p177 = scmp.eq.s32.totalorder %s24, 1
      %p178 = por %p176, %p177
      %p180 = scmp.ne.s32.totalorder %s163, %s179
      %p181 = scmp.eq.s32.totalorder %s24, 0
      %p182 = por %p180, %p181
      %p183 = scmp.le.s32.totalorder 1, %s18
      %p184 = scmp.lt.s32.totalorder %s18, 3
      %p185 = pnand %p183, %p184
      %p186 = pneg %p185
      // Predicated region
      $region9: #{tpu_custom_call.1} parent=5 // pred_check
        _
      $region10: #{tpu_custom_call.1} parent=5 // pred_check_branch
        %188 = sbr.rel (%p185) target = $region12
      $region11: #{tpu_custom_call.1} parent=5 // pred_region
        %s189 = ssub.s32 %s18, 1
        // Predicated region
        $region13: #{tpu_custom_call.1} parent=11 // pred_check
          %p190 = pneg %p65
        $region14: #{tpu_custom_call.1} parent=11 // pred_check_branch
          %192 = sbr.rel (%p190) target = $region16
        $region15: #{tpu_custom_call.1} parent=11 // pred_region
          _
        $region16: #{tpu_custom_call.1} parent=11 // pred_fallthru
          _
        // Predicated region
        $region17: #{tpu_custom_call.1} parent=11 // pred_check
          %p193 = pneg %p86
        $region18: #{tpu_custom_call.1} parent=11 // pred_check_branch
          %195 = sbr.rel (%p193) target = $region20
        $region19: #{tpu_custom_call.1} parent=11 // pred_region
          _
        $region20: #{tpu_custom_call.1} parent=11 // pred_fallthru
          _
        // Predicated region
        $region21: #{tpu_custom_call.1} parent=11 // pred_check
          %p196 = pneg %p107
        $region22: #{tpu_custom_call.1} parent=11 // pred_check_branch
          %198 = sbr.rel (%p196) target = $region24
        $region23: #{tpu_custom_call.1} parent=11 // pred_region
          _
        $region24: #{tpu_custom_call.1} parent=11 // pred_fallthru
          _
        // Predicated region
        $region25: #{tpu_custom_call.1} parent=11 // pred_check
          %p199 = pneg %p128
        $region26: #{tpu_custom_call.1} parent=11 // pred_check_branch
          %201 = sbr.rel (%p199) target = $region28
        $region27: #{tpu_custom_call.1} parent=11 // pred_region
          _
        $region28: #{tpu_custom_call.1} parent=11 // pred_fallthru
          _
        // Predicated region
        $region29: #{tpu_custom_call.1} parent=11 // pred_check
          %p202 = pneg %p149
        $region30: #{tpu_custom_call.1} parent=11 // pred_check_branch
          %204 = sbr.rel (%p202) target = $region32
        $region31: #{tpu_custom_call.1} parent=11 // pred_region
          _
        $region32: #{tpu_custom_call.1} parent=11 // pred_fallthru
          _
      $region12: #{tpu_custom_call.1} parent=5 // pred_fallthru
        _
      %p205 = scmp.lt.s32.totalorder %s18, 2
      // Predicated region
      $region33: #{tpu_custom_call.1} parent=5 // pred_check
        %p206 = pneg %p205
      $region34: #{tpu_custom_call.1} parent=5 // pred_check_branch
        %208 = sbr.rel (%p206) target = $region36
      $region35: #{tpu_custom_call.1} parent=5 // pred_region
        // Predicated region
        $region37: #{tpu_custom_call.1} parent=35 // pred_check
          %p209 = pneg %p38
        $region38: #{tpu_custom_call.1} parent=35 // pred_check_branch
          %211 = sbr.rel (%p209) target = $region40
        $region39: #{tpu_custom_call.1} parent=35 // pred_region
          %s212 = sand.u32 %s28, 1
          %s213 = scalar_lea.sflag [#allocation3], %s212
          %s214 = sand.u32 %s28, 1
          %s215 = smul.addr %s214, 24
          %s216 = scalar_lea.vmem [#allocation2], %s215
          %s218 = ssub.s32 384, 384
          %219 = vsyncadd %s213, %s218
          %s220 = smul.addr %s18, 3
          %s221 = smul.addr %s220, 128
          %s222 = scalar_lea.hbm %s0, %s221
          %s224 = sshll.u32 %s216, 4
          %s225 = int_to_ptr.vmem [resolvable:$true] %s224
          %227 = dma.hbm_to_vmem [thread:$0]  %s222, 384, %s225, %s213
        $region40: #{tpu_custom_call.1} parent=35 // pred_fallthru
          _
      $region36: #{tpu_custom_call.1} parent=5 // pred_fallthru
        _
      %p228 = scmp.le.s32.totalorder 1, %s18
      %p229 = scmp.lt.s32.totalorder %s18, 3
      %p230 = pnand %p228, %p229
      %p231 = pneg %p230
      // Predicated region
      $region41: #{tpu_custom_call.1} parent=5 // pred_check
        _
      $region42: #{tpu_custom_call.1} parent=5 // pred_check_branch
        %233 = sbr.rel (%p230) target = $region44
      $region43: #{tpu_custom_call.1} parent=5 // pred_region
        %s234 = ssub.s32 %s18, 1
        %s235 = sand.u32 %s31, 1
        %s236 = scalar_lea.sflag [#allocation3], %s235
        %s237 = sand.u32 %s31, 1
        %s238 = smul.addr %s237, 24
        %s239 = scalar_lea.vmem [#allocation2], %s238
        // Predicated region
        $region45: #{tpu_custom_call.1} parent=43 // pred_check
          %p240 = pneg %p44
        $region46: #{tpu_custom_call.1} parent=43 // pred_check_branch
          %242 = sbr.rel (%p240) target = $region48
        $region47: #{tpu_custom_call.1} parent=43 // pred_region
          %243 = dma.done %s236, 384
        $region48: #{tpu_custom_call.1} parent=43 // pred_fallthru
          _
        %s244 = sand.u32 %s31, 1
        %s245 = scalar_lea.sflag [#allocation3], %s244
        %s246 = sand.u32 %s31, 1
        %s247 = smul.addr %s246, 24
        %s248 = scalar_lea.vmem [#allocation2], %s247
        %p249 = pneg %p44
        %p250 = pneg %p41
        %p251 = pneg %p65
        %p252 = pneg %p62
        %p253 = pneg %p86
        %p254 = pneg %p83
        %p255 = pneg %p107
        %p256 = pneg %p104
        %p257 = pneg %p128
        %p258 = pneg %p125
        %p259 = pneg %p149
        %p260 = pneg %p146
        %p261 = pneg %p175
        %p262 = pneg %p172
        %s263 = sand.u32 %s162, 1
        %s264 = scalar_lea.sflag [#allocation4], %s263
        %s265 = sand.u32 %s162, 1
        %s266 = smul.addr %s265, 24
        %s267 = scalar_lea.vmem [#allocation5], %s266
        %v269 = vld [vmem:[%s239] sm:$0xff]
        %v270 = vld [vmem:[%s239 + $0x8] sm:$0xff]
        %v271 = vld [vmem:[%s239 + $0x10] sm:$0xff]
        %v272 = vld [vmem:[%s2] sm:$0xff]
        %274 = vset.pattern.permute.xlu0 0
        %275 = vperm.xlu0 %274, %v272
        %v276 = vpop.permute.xlu0 %275
        %v278 = vmul.f32 %v269, %v276
        %v279 = vmul.f32 %v270, %v276
        %v280 = vmul.f32 %v271, %v276
        %v281 = vld [vmem:[%s3] sm:$0xff]
        %283 = vset.pattern.permute.xlu0 0
        %284 = vperm.xlu0 %283, %v281
        %v285 = vpop.permute.xlu0 %284
        %v287 = vadd.f32 %v278, %v285
        %v288 = vadd.f32 %v279, %v285
        %v289 = vadd.f32 %v280, %v285
        %v290 = vmax.f32 %v287, 0.0
        %v291 = vmax.f32 %v288, 0.0
        %v292 = vmax.f32 %v289, 0.0
        %v293 = vld [vmem:[%s1] sm:$0x7]
        %v295 = vlaneseq
        %v296 = vshrl.u32 %v295, 7
        %v297 = vsub.s32 0, %v296
        %v298 = vrot.slane %v293, %v297
        %v299 = vlaneseq
        %v300 = vshrl.u32 %v299, 7
        %v301 = vsub.s32 1, %v300
        %v302 = vrot.slane %v293, %v301
        %v303 = vlaneseq
        %v304 = vshrl.u32 %v303, 7
        %v305 = vsub.s32 2, %v304
        %v306 = vrot.slane %v293, %v305
        %v310 = vmul.f32 %v290, %v298
        %v311 = vmul.f32 %v291, %v302
        %v312 = vmul.f32 %v292, %v306
        %316 = vrot.lane.b32.xlu0 %v310, 127
        %v317 = vpop.permute.xlu0 %316
        %318 = vrot.lane.b32.xlu0 %v311, 127
        %v319 = vpop.permute.xlu0 %318
        %320 = vrot.lane.b32.xlu0 %v312, 127
        %v321 = vpop.permute.xlu0 %320
        %vm322 = vcmask 1039360
        %v323 = vsel %vm322, %v317, %v319
        %v324 = vsel %vm322, %v319, %v321
        %328 = vrot.lane.b32.xlu0 %v310, 126
        %v329 = vpop.permute.xlu0 %328
        %330 = vrot.lane.b32.xlu0 %v311, 126
        %v331 = vpop.permute.xlu0 %330
        %332 = vrot.lane.b32.xlu0 %v312, 126
        %v333 = vpop.permute.xlu0 %332
        %vm334 = vcmask 1031168
        %v335 = vsel %vm334, %v329, %v331
        %v336 = vsel %vm334, %v331, %v333
        %340 = vrot.lane.b32.xlu0 %v310, 110
        %v341 = vpop.permute.xlu0 %340
        %342 = vrot.lane.b32.xlu0 %v311, 110
        %v343 = vpop.permute.xlu0 %342
        %344 = vrot.lane.b32.xlu0 %v312, 110
        %v345 = vpop.permute.xlu0 %344
        %vm346 = vcmask 900096
        %v347 = vsel %vm346, %v341, %v343
        %v348 = vsel %vm346, %v343, %v345
        %352 = vrot.lane.b32.xlu0 %v310, 109
        %v353 = vpop.permute.xlu0 %352
        %354 = vrot.lane.b32.xlu0 %v311, 109
        %v355 = vpop.permute.xlu0 %354
        %356 = vrot.lane.b32.xlu0 %v312, 109
        %v357 = vpop.permute.xlu0 %356
        %vm358 = vcmask 891904
        %v359 = vsel %vm358, %v353, %v355
        %v360 = vsel %vm358, %v355, %v357
        %364 = vrot.lane.b32.xlu0 %v310, 108
        %v365 = vpop.permute.xlu0 %364
        %366 = vrot.lane.b32.xlu0 %v311, 108
        %v367 = vpop.permute.xlu0 %366
        %368 = vrot.lane.b32.xlu0 %v312, 108
        %v369 = vpop.permute.xlu0 %368
        %vm370 = vcmask 883712
        %v371 = vsel %vm370, %v365, %v367
        %v372 = vsel %vm370, %v367, %v369
        %376 = vrot.lane.b32.xlu0 %v310, 92
        %v377 = vpop.permute.xlu0 %376
        %378 = vrot.lane.b32.xlu0 %v311, 92
        %v379 = vpop.permute.xlu0 %378
        %380 = vrot.lane.b32.xlu0 %v312, 92
        %v381 = vpop.permute.xlu0 %380
        %vm382 = vcmask 752640
        %v383 = vsel %vm382, %v377, %v379
        %v384 = vsel %vm382, %v379, %v381
        %388 = vrot.lane.b32.xlu0 %v310, 91
        %v389 = vpop.permute.xlu0 %388
        %390 = vrot.lane.b32.xlu0 %v311, 91
        %v391 = vpop.permute.xlu0 %390
        %392 = vrot.lane.b32.xlu0 %v312, 91
        %v393 = vpop.permute.xlu0 %392
        %vm394 = vcmask 744448
        %v395 = vsel %vm394, %v389, %v391
        %v396 = vsel %vm394, %v391, %v393
        %400 = vrot.lane.b32.xlu0 %v310, 90
        %v401 = vpop.permute.xlu0 %400
        %402 = vrot.lane.b32.xlu0 %v311, 90
        %v403 = vpop.permute.xlu0 %402
        %404 = vrot.lane.b32.xlu0 %v312, 90
        %v405 = vpop.permute.xlu0 %404
        %vm406 = vcmask 736256
        %v407 = vsel %vm406, %v401, %v403
        %v408 = vsel %vm406, %v403, %v405
        %v412 = vpack.c.bf16 %v323, %v310
        %v413 = vpack.c.bf16 %v324, %v311
        %v414 = vpack.c.bf16 %v321, %v312
        %v415 = vpack.c.bf16 %v347, %v335
        %v416 = vpack.c.bf16 %v348, %v336
        %v417 = vpack.c.bf16 %v345, %v333
        %v418 = vpack.c.bf16 %v371, %v359
        %v419 = vpack.c.bf16 %v372, %v360
        %v420 = vpack.c.bf16 %v369, %v357
        %v421 = vpack.c.bf16 %v395, %v383
        %v422 = vpack.c.bf16 %v396, %v384
        %v423 = vpack.c.bf16 %v393, %v381
        %v424 = vpack.c.bf16 %v407, %v407
        %v425 = vpack.c.bf16 %v408, %v408
        %v426 = vpack.c.bf16 %v405, %v405
        %v427 = vld [vmem:[%s4] sm:$0xf]
        %v428 = vld [vmem:[%s5] sm:$0xff]
        %430 = vset.pattern.permute.xlu0 0
        %431 = vperm.xlu0 %430, %v428
        %v432 = vpop.permute.xlu0 %431
        %vm434 = vcmask 588800
        %v436 = vsel %vm434, %v427, 0
        %vm438 = vcmask 1043456
        %v440 = vsel %vm438, %v424, 0
        %v443 = vsel %vm438, %v425, 0
        %v446 = vsel %vm438, %v426, 0
        %448 = vmatprep.subr.bf16.mxu0 %v413
        %449 = vmatpush1.bf16.msra.mxu0 %v412
        %450 = vmatprep.subr.bf16.mxu0 %v416
        %451 = vmatpush1.bf16.msra.mxu0 %v415
        %452 = vmatprep.subr.bf16.mxu0 %v419
        %453 = vmatpush1.bf16.msra.mxu0 %v418
        %454 = vmatprep.subr.bf16.mxu0 %v422
        %455 = vmatpush1.bf16.msra.mxu0 %v421
        %456 = vmatprep.subr.bf16.mxu0 %v443
        %457 = vmatpush1.bf16.msra.mxu0 %v440
        %458 = vmatprep.subr.bf16.mxu0 0
        %459 = vmatpush1.bf16.msra.mxu0 0
        %460 = vmatprep.subr.bf16.mxu0 0
        %461 = vmatpush1.bf16.msra.mxu0 0
        %462 = vmatprep.subr.bf16.mxu0 0
        %463 = vmatpush1.bf16.msra.mxu0 0
        %464 = vmatprep.subr.bf16.mxu0 0
        %465 = vmatpush1.bf16.msra.mxu0 0
        %466 = vmatprep.subr.bf16.mxu0 0
        %467 = vmatpush1.bf16.msra.mxu0 0
        %468 = vmatprep.subr.bf16.mxu0 0
        %469 = vmatpush1.bf16.msra.mxu0 0
        %470 = vmatprep.subr.bf16.mxu0 0
        %471 = vmatpush1.bf16.msra.mxu0 0
        %472 = vmatprep.subr.bf16.mxu0 0
        %473 = vmatpush1.bf16.msra.mxu0 0
        %474 = vmatprep.subr.bf16.mxu0 0
        %475 = vmatpush1.bf16.msra.mxu0 0
        %476 = vmatprep.subr.bf16.mxu0 0
        %477 = vmatpush1.bf16.msra.mxu0 0
        %478 = vmatprep.subr.bf16.mxu0 0
        %479 = vmatpush1.bf16.msra.mxu0 0
        %480 = vmatprep.mubr.bf16.mxu0 0
        %481 = vmatmul.mubr.bf16.gmra.mrb[0].mxu0 %v436
        %v482 = vpop.f32.mrb[0].mxu0
        %v483 = vadd.f32 %v432, %v482
        %v484 = vpop.f32.mrb[0].mxu0
        %v485 = vadd.f32 %v432, %v484
        %v486 = vpop.f32.mrb[0].mxu0
        %v487 = vpop.f32.mrb[0].mxu0
        %488 = vdwg.mxu0
        %489 = vmatprep.subr.bf16.mxu0 0
        %490 = vmatpush1.bf16.msra.mxu0 %v414
        %491 = vmatprep.subr.bf16.mxu0 0
        %492 = vmatpush1.bf16.msra.mxu0 %v417
        %493 = vmatprep.subr.bf16.mxu0 0
        %494 = vmatpush1.bf16.msra.mxu0 %v420
        %495 = vmatprep.subr.bf16.mxu0 0
        %496 = vmatpush1.bf16.msra.mxu0 %v423
        %497 = vmatprep.subr.bf16.mxu0 0
        %498 = vmatpush1.bf16.msra.mxu0 %v446
        %499 = vmatprep.subr.bf16.mxu0 0
        %500 = vmatpush1.bf16.msra.mxu0 0
        %501 = vmatprep.subr.bf16.mxu0 0
        %502 = vmatpush1.bf16.msra.mxu0 0
        %503 = vmatprep.subr.bf16.mxu0 0
        %504 = vmatpush1.bf16.msra.mxu0 0
        %505 = vmatprep.subr.bf16.mxu0 0
        %506 = vmatpush1.bf16.msra.mxu0 0
        %507 = vmatprep.subr.bf16.mxu0 0
        %508 = vmatpush1.bf16.msra.mxu0 0
        %509 = vmatprep.subr.bf16.mxu0 0
        %510 = vmatpush1.bf16.msra.mxu0 0
        %511 = vmatprep.subr.bf16.mxu0 0
        %512 = vmatpush1.bf16.msra.mxu0 0
        %513 = vmatprep.subr.bf16.mxu0 0
        %514 = vmatpush1.bf16.msra.mxu0 0
        %515 = vmatprep.subr.bf16.mxu0 0
        %516 = vmatpush1.bf16.msra.mxu0 0
        %517 = vmatprep.subr.bf16.mxu0 0
        %518 = vmatpush1.bf16.msra.mxu0 0
        %519 = vmatprep.subr.bf16.mxu0 0
        %520 = vmatpush1.bf16.msra.mxu0 0
        %521 = vmatprep.mubr.bf16.mxu0 0
        %522 = vmatmul.mubr.bf16.gmra.mrb[0].mxu0 %v436
        %v523 = vpop.f32.mrb[0].mxu0
        %v524 = vadd.f32 %v432, %v523
        %v525 = vpop.f32.mrb[0].mxu0
        %v526 = vpop.f32.mrb[0].mxu0
        %v527 = vpop.f32.mrb[0].mxu0
        %528 = vdwg.mxu0
        %529 = vst [vmem:[%s267] sm:$0xff] %v483
        %530 = vst [vmem:[%s267 + $0x8] sm:$0xff] %v485
        %vm531 = vcmask 261120
        %532 = vst.msk [vmem:[%s267 + $0x10] sm:$0xff] %vm531, %v524
        %s533 = sand.u32 %s162, 1
        %s534 = scalar_lea.sflag [#allocation4], %s533
        %s535 = sand.u32 %s162, 1
        %s536 = smul.addr %s535, 24
        %s537 = scalar_lea.vmem [#allocation5], %s536
        // Predicated region
        $region49: #{tpu_custom_call.1} parent=43 // pred_check
          %p538 = pneg %p172
        $region50: #{tpu_custom_call.1} parent=43 // pred_check_branch
          %540 = sbr.rel (%p538) target = $region52
        $region51: #{tpu_custom_call.1} parent=43 // pred_region
          %s542 = ssub.s32 384, 384
          %543 = vsyncadd %s534, %s542
          %s544 = smul.addr %s23, 3
          %s545 = smul.addr %s544, 128
          %s546 = scalar_lea.hbm %s6, %s545
          %s548 = sshll.u32 %s537, 4
          %s549 = int_to_ptr.vmem [resolvable:$true] %s548
          %551 = dma.vmem_to_hbm [thread:$0]  %s549, 384, %s546, %s534
        $region52: #{tpu_custom_call.1} parent=43 // pred_fallthru
          _
      $region44: #{tpu_custom_call.1} parent=5 // pred_fallthru
        _
      %p552 = scmp.le.s32.totalorder 2, %s18
      // Predicated region
      $region53: #{tpu_custom_call.1} parent=5 // pred_check
        %p553 = pneg %p552
      $region54: #{tpu_custom_call.1} parent=5 // pred_check_branch
        %555 = sbr.rel (%p553) target = $region56
      $region55: #{tpu_custom_call.1} parent=5 // pred_region
        %s556 = ssub.s32 %s18, 2
        // Predicated region
        $region57: #{tpu_custom_call.1} parent=55 // pred_check
          %p557 = pneg %p178
        $region58: #{tpu_custom_call.1} parent=55 // pred_check_branch
          %559 = sbr.rel (%p557) target = $region60
        $region59: #{tpu_custom_call.1} parent=55 // pred_region
          %s560 = sand.u32 %s163, 1
          %s561 = scalar_lea.sflag [#allocation4], %s560
          %s562 = sand.u32 %s163, 1
          %s563 = smul.addr %s562, 24
          %s564 = scalar_lea.vmem [#allocation5], %s563
          %565 = dma.done %s561, 384
        $region60: #{tpu_custom_call.1} parent=55 // pred_fallthru
          _
      $region56: #{tpu_custom_call.1} parent=5 // pred_fallthru
        _
    $region6: #{tpu_custom_call.1} parent=1 // loop_footer
      %s22 = sadd.s32 1, %s18
    $region7: #{tpu_custom_call.1} parent=1 // loop_footer_branch
      %17 = sbr.rel target = $region3
    $region8: #{tpu_custom_call.1} parent=1 // loop_exit
      _
    %566 = vsyncpa [#allocation3], 1
    %s567 = scalar_lea.sflag [#allocation3], 1
    %568 = vsyncpa %s567, 1
    %569 = vsyncpa [#allocation4], 1
    %s570 = scalar_lea.sflag [#allocation4], 1
    %571 = vsyncpa %s570, 1

</llo_original>
